<compile_context>
chip_gen: v5e
topology: v5e:2x2
jax: 0.10.0
libtpu: 0.0.40
codegen_flags: <defaults>
</compile_context>

<pallas_src>
import jax
import jax.numpy as jnp
from jax.experimental import pallas as pl
from jax.experimental.pallas import tpu as pltpu

IN_F = 4        # input features
HID = 50        # hidden units
OUT = 3         # classes
H_SUB = 64      # hidden padded to a sublane multiple (matmul K dim)
OUT_PAD = 8     # output rows padded to one sublane group
LANE = 128      # TPU lane width
BLOCK_B = 8192  # max batch-tile size (lanes per grid step)


def irisnet_kernel(xt_ref, p1_ref, p2_ref, out_ref):
    # xt : (4, tb)          x transposed, samples along lanes
    # p1 : (H_SUB, 8)       cols 0..3 = w1^T, col 4 = b1, col 5 rows 0..2 = b2
    # p2 : (OUT_PAD, H_SUB) rows 0..2 = w2^T, rest zero
    # out: (OUT_PAD, tb)    logits^T (rows 0..2 useful)
    xt = xt_ref[...]
    p1 = p1_ref[...]
    # ---- fc1 + b1 on the VPU: K=4 unrolled outer-product FMAs ----
    h = p1[:, IN_F:IN_F + 1] + p1[:, 0:1] * xt[0:1, :]
    for k in range(1, IN_F):
        h = h + p1[:, k:k + 1] * xt[k:k + 1, :]
    h = jnp.maximum(h, 0.0)                                   # ReLU
    # ---- fc2 on the MXU: (8,64)@(64,tb), + b2 from the packed column ----
    y = jnp.dot(p2_ref[...], h, preferred_element_type=jnp.float32)
    out_ref[...] = (y + p1[0:OUT_PAD, IN_F + 1:IN_F + 2]).astype(out_ref.dtype)


def _cdiv(a, b):
    return (a + b - 1) // b


def _round_up(n, m):
    return _cdiv(n, m) * m


def _choose_tile(B):
    """Lane-aligned, balanced batch tile; >=2 grid steps once B > 128."""
    if B <= LANE:
        return B                          # single (possibly partial-lane) tile
    n_tiles = max(_cdiv(B, BLOCK_B), 2)   # cap tile size + 2-core occupancy
    return _round_up(_cdiv(B, n_tiles), LANE)


def pack_params(w1, b1, w2, b2):
    """Pack (w1,b1,w2,b2) into two small resident f32 arrays."""
    w1 = jnp.asarray(w1, jnp.float32).reshape(IN_F, HID)
    b1 = jnp.asarray(b1, jnp.float32).reshape(HID)
    w2 = jnp.asarray(w2, jnp.float32).reshape(HID, OUT)
    b2 = jnp.asarray(b2, jnp.float32).reshape(OUT)
    p1 = jnp.zeros((H_SUB, 8), jnp.float32)
    p1 = p1.at[0:HID, 0:IN_F].set(w1.T)        # p1[j,k] = w1[k,j]
    p1 = p1.at[0:HID, IN_F].set(b1)            # column 4: b1
    p1 = p1.at[0:OUT, IN_F + 1].set(b2)        # column 5 rows 0..2: b2
    p2 = jnp.zeros((OUT_PAD, H_SUB), jnp.float32)
    p2 = p2.at[0:OUT, 0:HID].set(w2.T)         # p2[c,j] = w2[j,c]
    return p1, p2


def irisnet_forward(x, p1, p2):
    x = jnp.asarray(x, jnp.float32)
    B = x.shape[0]
    xt = x.T                                    # (4, B): tiny, lane-dense DMA
    tb = _choose_tile(B)
    grid = (pl.cdiv(B, tb),)                    # partial last block, no padding
    out_t = pl.pallas_call(
        irisnet_kernel,
        out_shape=jax.ShapeDtypeStruct((OUT_PAD, B), jnp.float32),
        grid=grid,
        in_specs=[
            pl.BlockSpec((IN_F, tb), lambda i: (0, i)),        # x^T streamed
            pl.BlockSpec((H_SUB, 8), lambda i: (0, 0)),        # resident fc1 pack
            pl.BlockSpec((OUT_PAD, H_SUB), lambda i: (0, 0)),  # resident fc2 pack
        ],
        out_specs=pl.BlockSpec((OUT_PAD, tb), lambda i: (0, i)),
        compiler_params=pltpu.CompilerParams(
            dimension_semantics=("parallel",),   # shard batch tiles over cores
            vmem_limit_bytes=32 << 20),
    )(xt, p1, p2)
    return out_t[:OUT, :].T                      # (B, 3)


def init_params(key):
    # PyTorch nn.Linear default init: U(-1/sqrt(fan_in), 1/sqrt(fan_in)).
    k1, k2, k3, k4 = jax.random.split(key, 4)
    bound1 = 1.0 / jnp.sqrt(float(IN_F))
    bound2 = 1.0 / jnp.sqrt(float(HID))
    w1 = jax.random.uniform(k1, (IN_F, HID), jnp.float32, -bound1, bound1)
    b1 = jax.random.uniform(k2, (HID,), jnp.float32, -bound1, bound1)
    w2 = jax.random.uniform(k3, (HID, OUT), jnp.float32, -bound2, bound2)
    b2 = jax.random.uniform(k4, (OUT,), jnp.float32, -bound2, bound2)
    return w1, b1, w2, b2


if __name__ == "__main__":
    key = jax.random.PRNGKey(0)
    kx1, kx2, kx3, kp = jax.random.split(key, 4)
    w1, b1, w2, b2 = init_params(kp)
    p1, p2 = pack_params(w1, b1, w2, b2)

    def ref_fn(x):
        return jnp.maximum(x @ w1 + b1[None, :], 0.0) @ w2 + b2[None, :]

    # Small batch (single tile, lane dim == full array dim).
    B = 8
    x = jax.random.normal(kx1, (B, IN_F), jnp.float32)
    out = jax.block_until_ready(irisnet_forward(x, p1, p2))
    assert out.shape == (B, OUT)
    assert jnp.allclose(out, ref_fn(x), atol=1e-5, rtol=1e-5)

    # Unaligned small batch (partial lanes, masked output store).
    B2 = 100
    x2 = jax.random.normal(kx2, (B2, IN_F), jnp.float32)
    out2 = jax.block_until_ready(irisnet_forward(x2, p1, p2))
    assert out2.shape == (B2, OUT)
    assert jnp.allclose(out2, ref_fn(x2), atol=1e-5, rtol=1e-5)

    # Multi-tile grid with a partial last block (no wrapper-side padding).
    B3 = 640
    x3 = jax.random.normal(kx3, (B3, IN_F), jnp.float32)
    out3 = jax.block_until_ready(irisnet_forward(x3, p1, p2))
    assert out3.shape == (B3, OUT)
    assert jnp.allclose(out3, ref_fn(x3), atol=1e-5, rtol=1e-5)

    print("KERNEL_OK")
</pallas_src>

<mosaic_0001>
module attributes {stable_mosaic.version = 11 : i64} {
  func.func @irisnet_kernel(%arg0: i32, %arg1: memref<4x8xf32, #tpu.memory_space<vmem>>, %arg2: memref<64x8xf32, #tpu.memory_space<vmem>>, %arg3: memref<8x64xf32, #tpu.memory_space<vmem>>, %arg4: memref<8x8xf32, #tpu.memory_space<vmem>>) attributes {dimension_semantics = [#tpu.dimension_semantics<parallel>], iteration_bounds = array<i64: 1>, scalar_prefetch = 0 : i64, scratch_operands = 0 : i64, tpu.core_type = #tpu.core_type<tc>, window_params = [{transform_indices = @transform_0, window_bounds = array<i64: 4, 8>}, {pipeline_mode = #tpu.pipeline_mode<synchronous>, transform_indices = @transform_1, window_bounds = array<i64: 64, 8>}, {pipeline_mode = #tpu.pipeline_mode<synchronous>, transform_indices = @transform_2, window_bounds = array<i64: 8, 64>}, {transform_indices = @transform_3, window_bounds = array<i64: 8, 8>}]} {
    %c0 = arith.constant 0 : index
    %c0_0 = arith.constant 0 : index
    %0 = vector.load %arg1[%c0, %c0_0] : memref<4x8xf32, #tpu.memory_space<vmem>>, vector<4x8xf32>
    %c0_1 = arith.constant 0 : index
    %c0_2 = arith.constant 0 : index
    %1 = vector.load %arg2[%c0_1, %c0_2] : memref<64x8xf32, #tpu.memory_space<vmem>>, vector<64x8xf32>
    %2 = vector.extract_strided_slice %1 {offsets = [0, 4], sizes = [64, 1], strides = [1, 1]} : vector<64x8xf32> to vector<64x1xf32>
    %3 = vector.extract_strided_slice %1 {offsets = [0, 0], sizes = [64, 1], strides = [1, 1]} : vector<64x8xf32> to vector<64x1xf32>
    %4 = vector.extract_strided_slice %0 {offsets = [0, 0], sizes = [1, 8], strides = [1, 1]} : vector<4x8xf32> to vector<1x8xf32>
    %5 = vector.broadcast %3 : vector<64x1xf32> to vector<64x8xf32>
    %6 = vector.broadcast %4 : vector<1x8xf32> to vector<64x8xf32>
    %7 = arith.mulf %5, %6 : vector<64x8xf32>
    %8 = vector.broadcast %2 : vector<64x1xf32> to vector<64x8xf32>
    %9 = arith.addf %8, %7 : vector<64x8xf32>
    %10 = vector.extract_strided_slice %1 {offsets = [0, 1], sizes = [64, 1], strides = [1, 1]} : vector<64x8xf32> to vector<64x1xf32>
    %11 = vector.extract_strided_slice %0 {offsets = [1, 0], sizes = [1, 8], strides = [1, 1]} : vector<4x8xf32> to vector<1x8xf32>
    %12 = vector.broadcast %10 : vector<64x1xf32> to vector<64x8xf32>
    %13 = vector.broadcast %11 : vector<1x8xf32> to vector<64x8xf32>
    %14 = arith.mulf %12, %13 : vector<64x8xf32>
    %15 = arith.addf %9, %14 : vector<64x8xf32>
    %16 = vector.extract_strided_slice %1 {offsets = [0, 2], sizes = [64, 1], strides = [1, 1]} : vector<64x8xf32> to vector<64x1xf32>
    %17 = vector.extract_strided_slice %0 {offsets = [2, 0], sizes = [1, 8], strides = [1, 1]} : vector<4x8xf32> to vector<1x8xf32>
    %18 = vector.broadcast %16 : vector<64x1xf32> to vector<64x8xf32>
    %19 = vector.broadcast %17 : vector<1x8xf32> to vector<64x8xf32>
    %20 = arith.mulf %18, %19 : vector<64x8xf32>
    %21 = arith.addf %15, %20 : vector<64x8xf32>
    %22 = vector.extract_strided_slice %1 {offsets = [0, 3], sizes = [64, 1], strides = [1, 1]} : vector<64x8xf32> to vector<64x1xf32>
    %23 = vector.extract_strided_slice %0 {offsets = [3, 0], sizes = [1, 8], strides = [1, 1]} : vector<4x8xf32> to vector<1x8xf32>
    %24 = vector.broadcast %22 : vector<64x1xf32> to vector<64x8xf32>
    %25 = vector.broadcast %23 : vector<1x8xf32> to vector<64x8xf32>
    %26 = arith.mulf %24, %25 : vector<64x8xf32>
    %27 = arith.addf %21, %26 : vector<64x8xf32>
    %cst = arith.constant 0.000000e+00 : f32
    %28 = vector.broadcast %cst : f32 to vector<64x8xf32>
    %29 = arith.maximumf %27, %28 : vector<64x8xf32>
    %c0_3 = arith.constant 0 : index
    %c0_4 = arith.constant 0 : index
    %30 = vector.load %arg3[%c0_3, %c0_4] : memref<8x64xf32, #tpu.memory_space<vmem>>, vector<8x64xf32>
    %cst_5 = arith.constant dense<0.000000e+00> : vector<8x8xf32>
    %31 = tpu.matmul %30, %29, %cst_5 {dimension_numbers = #tpu.dot_dimension_numbers<[1], [0], [0], [1], [0, 0, 1, 1], [], []>} : vector<8x64xf32>, vector<64x8xf32>, vector<8x8xf32> -> vector<8x8xf32>
    %32 = vector.extract_strided_slice %1 {offsets = [0, 5], sizes = [8, 1], strides = [1, 1]} : vector<64x8xf32> to vector<8x1xf32>
    %33 = vector.broadcast %32 : vector<8x1xf32> to vector<8x8xf32>
    %34 = arith.addf %31, %33 : vector<8x8xf32>
    %c0_6 = arith.constant 0 : index
    %c0_7 = arith.constant 0 : index
    %35 = vector.load %arg4[%c0_6, %c0_7] : memref<8x8xf32, #tpu.memory_space<vmem>>, vector<8x8xf32>
    tpu.vector_store %arg4[%c0_6, %c0_7], %34 {strides = array<i32>} : memref<8x8xf32, #tpu.memory_space<vmem>>, vector<8x8xf32>,
    return
  }
  func.func @transform_0(%arg0: i32) -> (i32, i32) {
    %c0_i32 = arith.constant 0 : i32
    %c0_i32_0 = arith.constant 0 : i32
    return %c0_i32, %arg0 : i32, i32
  }
  func.func @transform_1(%arg0: i32) -> (i32, i32) {
    %c0_i32 = arith.constant 0 : i32
    %c0_i32_0 = arith.constant 0 : i32
    %c0_i32_1 = arith.constant 0 : i32
    return %c0_i32, %c0_i32_0 : i32, i32
  }
  func.func @transform_2(%arg0: i32) -> (i32, i32) {
    %c0_i32 = arith.constant 0 : i32
    %c0_i32_0 = arith.constant 0 : i32
    %c0_i32_1 = arith.constant 0 : i32
    return %c0_i32, %c0_i32_0 : i32, i32
  }
  func.func @transform_3(%arg0: i32) -> (i32, i32) {
    %c0_i32 = arith.constant 0 : i32
    %c0_i32_0 = arith.constant 0 : i32
    return %c0_i32, %arg0 : i32, i32
  }
}

</mosaic_0001>

<llo_original>
// kernel: tpu_custom_call.1
$region0: #{tpu_custom_call.1}
  #allocation0 [shape = 'u32[]', space=smem, size = 0x4, offset = 0x4, fixed_abs, tag = 'smem constant byte address 0x4 - core index']
  #allocation1 [shape = 'u32[72,128]{1,0:T(1,128)}', space=vmem, size = 0x9000, scoped, tag = 'internal scratch']
  %s0 = inlined_call_operand.vmem [shape: f32[4,8], index: 0, kind: input, shape index: {}]
  %s1 = inlined_call_operand.vmem [shape: f32[64,8], index: 1, kind: input, shape index: {}]
  %s2 = inlined_call_operand.vmem [shape: f32[8,64], index: 2, kind: input, shape index: {}]
  %s3 = inlined_call_operand.hbm [shape: f32[8,8], index: 3, kind: output, shape index: {}]
  %s4 = sld [smem:[#allocation0]]
  $region22: #{tpu_custom_call.1} parent=0
    _
  %s6 = ssub.s32 1, %s4
  %s7 = scalar_select 0, %s6, %s4
  $region1: #{tpu_custom_call.1} parent=0
    #allocation2 [shape = 'u8[4096]{0}', space=vmem, size = 0x1000, scoped, tag = 'output window, operand 0, single buffered']
    #allocation3 [shape = 's32[1]{0}', space=sflag, size = 0x4, scoped, tag = 'scoped memory for tpu_custom_call.1']
    %8 = vsyncpa [#allocation3], 0
    // Predicated region
    $region2: #{tpu_custom_call.1} parent=1 // pred_check
      _
    $region3: #{tpu_custom_call.1} parent=1 // pred_check_branch
      %10 = sbr.rel (0) target = $region5
    $region4: #{tpu_custom_call.1} parent=1 // pred_region
      _
    $region5: #{tpu_custom_call.1} parent=1 // pred_fallthru
      _
    // Predicated region
    $region6: #{tpu_custom_call.1} parent=1 // pred_check
      _
    $region7: #{tpu_custom_call.1} parent=1 // pred_check_branch
      %12 = sbr.rel (0) target = $region9
    $region8: #{tpu_custom_call.1} parent=1 // pred_region
      _
    $region9: #{tpu_custom_call.1} parent=1 // pred_fallthru
      _
    // Predicated region
    $region10: #{tpu_custom_call.1} parent=1 // pred_check
      _
    $region11: #{tpu_custom_call.1} parent=1 // pred_check_branch
      %14 = sbr.rel (0) target = $region13
    $region12: #{tpu_custom_call.1} parent=1 // pred_region
      _
    $region13: #{tpu_custom_call.1} parent=1 // pred_fallthru
      _
    %v15 = vld [vmem:[%s0] sm:$0xf]
    %v16 = vld [vmem:[%s1] sm:$0xff]
    %v17 = vld [vmem:[%s1 + $0x8] sm:$0xff]
    %v18 = vld [vmem:[%s1 + $0x10] sm:$0xff]
    %v19 = vld [vmem:[%s1 + $0x18] sm:$0xff]
    %v20 = vld [vmem:[%s1 + $0x20] sm:$0xff]
    %v21 = vld [vmem:[%s1 + $0x28] sm:$0xff]
    %v22 = vld [vmem:[%s1 + $0x30] sm:$0xff]
    %v23 = vld [vmem:[%s1 + $0x38] sm:$0xff]
    %25 = vset.pattern.permute.xlu0 0
    %26 = vperm.xlu0 %25, %v16
    %v27 = vpop.permute.xlu0 %26
    %30 = vset.pattern.permute.xlu0 0
    %31 = vperm.xlu0 %30, %v17
    %v32 = vpop.permute.xlu0 %31
    %35 = vset.pattern.permute.xlu0 0
    %36 = vperm.xlu0 %35, %v18
    %v37 = vpop.permute.xlu0 %36
    %40 = vset.pattern.permute.xlu0 0
    %41 = vperm.xlu0 %40, %v19
    %v42 = vpop.permute.xlu0 %41
    %45 = vset.pattern.permute.xlu0 0
    %46 = vperm.xlu0 %45, %v20
    %v47 = vpop.permute.xlu0 %46
    %50 = vset.pattern.permute.xlu0 0
    %51 = vperm.xlu0 %50, %v21
    %v52 = vpop.permute.xlu0 %51
    %55 = vset.pattern.permute.xlu0 0
    %56 = vperm.xlu0 %55, %v22
    %v57 = vpop.permute.xlu0 %56
    %60 = vset.pattern.permute.xlu0 0
    %61 = vperm.xlu0 %60, %v23
    %v62 = vpop.permute.xlu0 %61
    %v64 = vperm.slane %v15, 0
    %v65 = vmul.f32 %v27, %v64
    %v66 = vmul.f32 %v32, %v64
    %v67 = vmul.f32 %v37, %v64
    %v68 = vmul.f32 %v42, %v64
    %v69 = vmul.f32 %v47, %v64
    %v70 = vmul.f32 %v52, %v64
    %v71 = vmul.f32 %v57, %v64
    %v72 = vmul.f32 %v62, %v64
    %73 = vset.pattern.permute.xlu0 4
    %74 = vperm.xlu0 %73, %v16
    %v75 = vpop.permute.xlu0 %74
    %77 = vset.pattern.permute.xlu0 4
    %78 = vperm.xlu0 %77, %v17
    %v79 = vpop.permute.xlu0 %78
    %81 = vset.pattern.permute.xlu0 4
    %82 = vperm.xlu0 %81, %v18
    %v83 = vpop.permute.xlu0 %82
    %85 = vset.pattern.permute.xlu0 4
    %86 = vperm.xlu0 %85, %v19
    %v87 = vpop.permute.xlu0 %86
    %89 = vset.pattern.permute.xlu0 4
    %90 = vperm.xlu0 %89, %v20
    %v91 = vpop.permute.xlu0 %90
    %93 = vset.pattern.permute.xlu0 4
    %94 = vperm.xlu0 %93, %v21
    %v95 = vpop.permute.xlu0 %94
    %97 = vset.pattern.permute.xlu0 4
    %98 = vperm.xlu0 %97, %v22
    %v99 = vpop.permute.xlu0 %98
    %101 = vset.pattern.permute.xlu0 4
    %102 = vperm.xlu0 %101, %v23
    %v103 = vpop.permute.xlu0 %102
    %v105 = vadd.f32 %v75, %v65
    %v106 = vadd.f32 %v79, %v66
    %v107 = vadd.f32 %v83, %v67
    %v108 = vadd.f32 %v87, %v68
    %v109 = vadd.f32 %v91, %v69
    %v110 = vadd.f32 %v95, %v70
    %v111 = vadd.f32 %v99, %v71
    %v112 = vadd.f32 %v103, %v72
    %113 = vset.pattern.permute.xlu0 1
    %114 = vperm.xlu0 %113, %v16
    %v115 = vpop.permute.xlu0 %114
    %117 = vset.pattern.permute.xlu0 1
    %118 = vperm.xlu0 %117, %v17
    %v119 = vpop.permute.xlu0 %118
    %121 = vset.pattern.permute.xlu0 1
    %122 = vperm.xlu0 %121, %v18
    %v123 = vpop.permute.xlu0 %122
    %125 = vset.pattern.permute.xlu0 1
    %126 = vperm.xlu0 %125, %v19
    %v127 = vpop.permute.xlu0 %126
    %129 = vset.pattern.permute.xlu0 1
    %130 = vperm.xlu0 %129, %v20
    %v131 = vpop.permute.xlu0 %130
    %133 = vset.pattern.permute.xlu0 1
    %134 = vperm.xlu0 %133, %v21
    %v135 = vpop.permute.xlu0 %134
    %137 = vset.pattern.permute.xlu0 1
    %138 = vperm.xlu0 %137, %v22
    %v139 = vpop.permute.xlu0 %138
    %141 = vset.pattern.permute.xlu0 1
    %142 = vperm.xlu0 %141, %v23
    %v143 = vpop.permute.xlu0 %142
    %v145 = vperm.slane %v15, 1
    %v146 = vmul.f32 %v115, %v145
    %v147 = vmul.f32 %v119, %v145
    %v148 = vmul.f32 %v123, %v145
    %v149 = vmul.f32 %v127, %v145
    %v150 = vmul.f32 %v131, %v145
    %v151 = vmul.f32 %v135, %v145
    %v152 = vmul.f32 %v139, %v145
    %v153 = vmul.f32 %v143, %v145
    %v154 = vadd.f32 %v105, %v146
    %v155 = vadd.f32 %v106, %v147
    %v156 = vadd.f32 %v107, %v148
    %v157 = vadd.f32 %v108, %v149
    %v158 = vadd.f32 %v109, %v150
    %v159 = vadd.f32 %v110, %v151
    %v160 = vadd.f32 %v111, %v152
    %v161 = vadd.f32 %v112, %v153
    %162 = vset.pattern.permute.xlu0 2
    %163 = vperm.xlu0 %162, %v16
    %v164 = vpop.permute.xlu0 %163
    %166 = vset.pattern.permute.xlu0 2
    %167 = vperm.xlu0 %166, %v17
    %v168 = vpop.permute.xlu0 %167
    %170 = vset.pattern.permute.xlu0 2
    %171 = vperm.xlu0 %170, %v18
    %v172 = vpop.permute.xlu0 %171
    %174 = vset.pattern.permute.xlu0 2
    %175 = vperm.xlu0 %174, %v19
    %v176 = vpop.permute.xlu0 %175
    %178 = vset.pattern.permute.xlu0 2
    %179 = vperm.xlu0 %178, %v20
    %v180 = vpop.permute.xlu0 %179
    %182 = vset.pattern.permute.xlu0 2
    %183 = vperm.xlu0 %182, %v21
    %v184 = vpop.permute.xlu0 %183
    %186 = vset.pattern.permute.xlu0 2
    %187 = vperm.xlu0 %186, %v22
    %v188 = vpop.permute.xlu0 %187
    %190 = vset.pattern.permute.xlu0 2
    %191 = vperm.xlu0 %190, %v23
    %v192 = vpop.permute.xlu0 %191
    %v194 = vperm.slane %v15, 2
    %v195 = vmul.f32 %v164, %v194
    %v196 = vmul.f32 %v168, %v194
    %v197 = vmul.f32 %v172, %v194
    %v198 = vmul.f32 %v176, %v194
    %v199 = vmul.f32 %v180, %v194
    %v200 = vmul.f32 %v184, %v194
    %v201 = vmul.f32 %v188, %v194
    %v202 = vmul.f32 %v192, %v194
    %v203 = vadd.f32 %v154, %v195
    %v204 = vadd.f32 %v155, %v196
    %v205 = vadd.f32 %v156, %v197
    %v206 = vadd.f32 %v157, %v198
    %v207 = vadd.f32 %v158, %v199
    %v208 = vadd.f32 %v159, %v200
    %v209 = vadd.f32 %v160, %v201
    %v210 = vadd.f32 %v161, %v202
    %211 = vset.pattern.permute.xlu0 3
    %212 = vperm.xlu0 %211, %v16
    %v213 = vpop.permute.xlu0 %212
    %215 = vset.pattern.permute.xlu0 3
    %216 = vperm.xlu0 %215, %v17
    %v217 = vpop.permute.xlu0 %216
    %219 = vset.pattern.permute.xlu0 3
    %220 = vperm.xlu0 %219, %v18
    %v221 = vpop.permute.xlu0 %220
    %223 = vset.pattern.permute.xlu0 3
    %224 = vperm.xlu0 %223, %v19
    %v225 = vpop.permute.xlu0 %224
    %227 = vset.pattern.permute.xlu0 3
    %228 = vperm.xlu0 %227, %v20
    %v229 = vpop.permute.xlu0 %228
    %231 = vset.pattern.permute.xlu0 3
    %232 = vperm.xlu0 %231, %v21
    %v233 = vpop.permute.xlu0 %232
    %235 = vset.pattern.permute.xlu0 3
    %236 = vperm.xlu0 %235, %v22
    %v237 = vpop.permute.xlu0 %236
    %239 = vset.pattern.permute.xlu0 3
    %240 = vperm.xlu0 %239, %v23
    %v241 = vpop.permute.xlu0 %240
    %v243 = vperm.slane %v15, 3
    %v244 = vmul.f32 %v213, %v243
    %v245 = vmul.f32 %v217, %v243
    %v246 = vmul.f32 %v221, %v243
    %v247 = vmul.f32 %v225, %v243
    %v248 = vmul.f32 %v229, %v243
    %v249 = vmul.f32 %v233, %v243
    %v250 = vmul.f32 %v237, %v243
    %v251 = vmul.f32 %v241, %v243
    %v252 = vadd.f32 %v203, %v244
    %v253 = vadd.f32 %v204, %v245
    %v254 = vadd.f32 %v205, %v246
    %v255 = vadd.f32 %v206, %v247
    %v256 = vadd.f32 %v207, %v248
    %v257 = vadd.f32 %v208, %v249
    %v258 = vadd.f32 %v209, %v250
    %v259 = vadd.f32 %v210, %v251
    %v260 = vmax.f32 %v252, 0.0
    %v261 = vmax.f32 %v253, 0.0
    %v262 = vmax.f32 %v254, 0.0
    %v263 = vmax.f32 %v255, 0.0
    %v264 = vmax.f32 %v256, 0.0
    %v265 = vmax.f32 %v257, 0.0
    %v266 = vmax.f32 %v258, 0.0
    %v267 = vmax.f32 %v259, 0.0
    %v268 = vld [vmem:[%s2] sm:$0xff]
    %269 = vset.pattern.permute.xlu0 5
    %270 = vperm.xlu0 %269, %v16
    %v271 = vpop.permute.xlu0 %270
    %vm273 = vcmask 523264
    %v275 = vsel %vm273, %v268, 0
    %277 = vmatpush.msra.mxu0 0.0
    %278 = vmatpush.msra.mxu0 0.0
    %279 = vmatpush.msra.mxu0 0.0
    %280 = vmatpush.msra.mxu0 0.0
    %281 = vmatpush.msra.mxu0 0.0
    %282 = vmatpush.msra.mxu0 0.0
    %283 = vmatpush.msra.mxu0 0.0
    %284 = vmatpush.msra.mxu0 0.0
    %285 = vmatpush.msra.mxu0 %v267
    %286 = vmatpush.msra.mxu0 %v266
    %287 = vmatpush.msra.mxu0 %v265
    %288 = vmatpush.msra.mxu0 %v264
    %289 = vmatpush.msra.mxu0 %v263
    %290 = vmatpush.msra.mxu0 %v262
    %291 = vmatpush.msra.mxu0 %v261
    %292 = vmatpush.msra.mxu0 %v260
    %293 = vmatmul.f32.gmra.mxu0 %v275
    %v294 = vpop.f32.mrf.mxu0
    %v295 = vadd.f32 %v271, %v294
    %296 = vdwg.mxu0
    %vm297 = vcmask 64512
    %298 = vst.msk [vmem:[#allocation2] sm:$0xff] %vm297, %v295
    // Predicated region
    $region14: #{tpu_custom_call.1} parent=1 // pred_check
      _
    $region15: #{tpu_custom_call.1} parent=1 // pred_check_branch
      %300 = sbr.rel (0) target = $region17
    $region16: #{tpu_custom_call.1} parent=1 // pred_region
      %302 = vsyncadd [#allocation3], 0
      %s304 = sshll.u32 [#allocation2], 4
      %s305 = int_to_ptr.vmem [resolvable:$true] %s304
      %s306 = sshll.u32 %s3, 4
      %s307 = int_to_ptr.hbm [resolvable:$true] %s306
      %309 = dma.vmem_to_hbm [thread:$0]  %s305, 128, %s307, [#allocation3]
    $region17: #{tpu_custom_call.1} parent=1 // pred_fallthru
      _
    // Predicated region
    $region18: #{tpu_custom_call.1} parent=1 // pred_check
      _
    $region19: #{tpu_custom_call.1} parent=1 // pred_check_branch
      %311 = sbr.rel (0) target = $region21
    $region20: #{tpu_custom_call.1} parent=1 // pred_region
      %313 = dma.done [#allocation3], 128
    $region21: #{tpu_custom_call.1} parent=1 // pred_fallthru
      _
    %314 = vsyncpa [#allocation3], 1

</llo_original>
